<compile_context>
chip_gen: v6e
topology: v6e:2x2x1
jax: 0.10.0
libtpu: 0.0.40
codegen_flags: <defaults>
</compile_context>

<pallas_src>
import jax
import jax.numpy as jnp
from jax.experimental import pallas as pl
from jax.experimental.pallas import tpu as pltpu

LANE = 128                     # padded width of the hidden layers
IN_F, H1, H2, OUT_F = 33, 20, 10, 2
AUX_ROWS = 16                  # rows 0..7 = w3^T (padded), row 8 = b1, row 9 = b2
ROW_B1, ROW_B2 = 8, 9
BIAS_COL = LANE - 1            # padded hidden unit used to carry the classifier bias
OUT_ROWS = 8                   # sublane-padded number of output classes


def mlp_kernel(x_ref, w_ref, aux_ref, o_ref):
    """One batch tile of the MLP.

    x_ref   : (TB, 33)   native-width input features
    w_ref   : (256, 128) rows   0..127 = zero-padded W1 (33x20),
                         rows 128..255 = zero-padded W2 (20x10)
    aux_ref : (16, 128)  rows 0..7 = zero-padded W3^T (2x10) with col 127 = b3,
                         row 8 = padded b1, row 9 = padded b2 (col 127 = 1.0)
    o_ref   : (8, TB)    transposed, lane-dense output; rows 0..1 are real
    """
    x = x_ref[...]                                   # (TB, 33)
    w1 = w_ref[0:IN_F, :]                            # (33, 128)
    w2 = w_ref[LANE:2 * LANE, :]                     # (128, 128)
    w3t = aux_ref[0:OUT_ROWS, :]                     # (8, 128)   incl. b3 in col 127
    b1 = aux_ref[ROW_B1:ROW_B1 + 1, :]               # (1, 128)
    b2 = aux_ref[ROW_B2:ROW_B2 + 1, :]               # (1, 128)   col 127 == 1.0

    # layer 1: Linear(33,20) + ReLU   (zero padding keeps cols >= 20 exactly 0)
    h1 = jnp.maximum(
        jnp.dot(x, w1, preferred_element_type=jnp.float32) + b1, 0.0)
    # layer 2: Linear(20,10) + ReLU   (col 127 becomes the constant bias unit = 1)
    h2 = jnp.maximum(
        jnp.dot(h1, w2, preferred_element_type=jnp.float32) + b2, 0.0)
    # classifier, transposed: (8,128) @ (128,TB) -> (8,TB); bias comes via col 127
    logits_t = jnp.dot(w3t, h2.T, preferred_element_type=jnp.float32)
    o_ref[...] = jax.nn.sigmoid(logits_t)


def pack_params(w1, b1, w2, b2, w3, b3):
    """Pack the six torch-style params into two slabs.  Call ONCE at init."""
    w1 = jnp.asarray(w1, jnp.float32)
    w2 = jnp.asarray(w2, jnp.float32)
    w3 = jnp.asarray(w3, jnp.float32)
    b1 = jnp.asarray(b1, jnp.float32).reshape(-1)
    b2 = jnp.asarray(b2, jnp.float32).reshape(-1)
    b3 = jnp.asarray(b3, jnp.float32).reshape(-1)

    w_pack = jnp.zeros((2 * LANE, LANE), jnp.float32)
    w_pack = w_pack.at[:IN_F, :H1].set(w1)                 # W1
    w_pack = w_pack.at[LANE:LANE + H1, :H2].set(w2)        # W2

    aux = jnp.zeros((AUX_ROWS, LANE), jnp.float32)
    aux = aux.at[:OUT_F, :H2].set(w3.T)                    # W3^T
    aux = aux.at[:OUT_F, BIAS_COL].set(b3)                 # b3 via bias unit
    aux = aux.at[ROW_B1, :H1].set(b1)                      # b1
    aux = aux.at[ROW_B2, :H2].set(b2)                      # b2
    aux = aux.at[ROW_B2, BIAS_COL].set(1.0)                # bias unit -> h2[:,127]=1
    return w_pack, aux


def _choose_tb(B):
    # Bucketed tile sizes (bounded recompiles).  tb is either the whole padded
    # batch (single step, tiny B) or a multiple of 128 so all blocks stay
    # (8,128)-aligned; for B > 128 the grid always has >= 2 steps (v7x megacore).
    if B <= 8:
        return 8
    if B <= 64:
        return 64
    if B <= 256:
        return 128
    if B <= 512:
        return 256
    if B <= 1024:
        return 512
    return 1024


def mlp_forward(x, w_pack, aux_pack):
    """x: (B, 33) float; returns (B, 2) sigmoid outputs."""
    B = x.shape[0]
    tb = _choose_tb(B)
    bp = ((B + tb - 1) // tb) * tb

    x_p = x.astype(jnp.float32)
    if bp != B:
        x_p = jnp.pad(x_p, ((0, bp - B), (0, 0)))          # batch pad only

    out_t = pl.pallas_call(
        mlp_kernel,
        out_shape=jax.ShapeDtypeStruct((OUT_ROWS, bp), jnp.float32),
        grid=(bp // tb,),
        in_specs=[
            pl.BlockSpec((tb, IN_F), lambda i: (i, 0)),            # x tile (33 wide)
            pl.BlockSpec((2 * LANE, LANE), lambda i: (0, 0)),      # weights (VMEM-resident)
            pl.BlockSpec((AUX_ROWS, LANE), lambda i: (0, 0)),      # aux     (VMEM-resident)
        ],
        out_specs=pl.BlockSpec((OUT_ROWS, tb), lambda i: (0, i)),  # lane-dense transposed out
        compiler_params=pltpu.CompilerParams(
            dimension_semantics=("parallel",)),
    )(x_p, w_pack, aux_pack)

    return out_t[:OUT_F, :B].T


def init_params(key):
    # Deterministic synthetic init (shapes match the torch module; weights are
    # stored transposed vs. torch, i.e. (in, out), so forward is x @ W + b).
    k1, k2, k3, k4, k5, k6 = jax.random.split(key, 6)
    w1 = jax.random.normal(k1, (IN_F, H1), jnp.float32) * 0.1
    b1 = jax.random.normal(k2, (1, H1), jnp.float32) * 0.1
    w2 = jax.random.normal(k3, (H1, H2), jnp.float32) * 0.1
    b2 = jax.random.normal(k4, (1, H2), jnp.float32) * 0.1
    w3 = jax.random.normal(k5, (H2, OUT_F), jnp.float32) * 0.1
    b3 = jax.random.normal(k6, (1, OUT_F), jnp.float32) * 0.1
    return w1, b1, w2, b2, w3, b3


def reference_forward(x, w1, b1, w2, b2, w3, b3):
    h1 = jnp.maximum(x @ w1 + b1, 0.0)
    h2 = jnp.maximum(h1 @ w2 + b2, 0.0)
    return jax.nn.sigmoid(h2 @ w3 + b3)


if __name__ == "__main__":
    key = jax.random.PRNGKey(0)
    kx, kp = jax.random.split(key)
    raw_params = init_params(kp)

    # Packing is done once, outside the per-call path (perf-review item #1).
    w_pack, aux_pack = pack_params(*raw_params)
    w_pack, aux_pack = jax.block_until_ready((w_pack, aux_pack))

    # small case matching the torch module (batch=2, 33 wpbc features)
    x = jax.random.normal(kx, (2, IN_F), jnp.float32)
    out = jax.block_until_ready(mlp_forward(x, w_pack, aux_pack))
    ref = reference_forward(x, *raw_params)
    assert out.shape == (2, OUT_F)
    assert jnp.allclose(out, ref, atol=1e-3, rtol=1e-3), "mismatch vs reference (B=2)"

    # exercise the tiled / multi-step grid path (non-multiple-of-tile batch)
    xb = jax.random.normal(jax.random.PRNGKey(1), (600, IN_F), jnp.float32)
    outb = jax.block_until_ready(mlp_forward(xb, w_pack, aux_pack))
    refb = reference_forward(xb, *raw_params)
    assert outb.shape == (600, OUT_F)
    assert jnp.allclose(outb, refb, atol=1e-3, rtol=1e-3), "mismatch vs reference (B=600)"

    print("KERNEL_OK")
</pallas_src>

<mosaic_0001>
module attributes {stable_mosaic.version = 11 : i64} {
  func.func @mlp_kernel(%arg0: i32, %arg1: memref<8x33xf32, #tpu.memory_space<vmem>>, %arg2: memref<256x128xf32, #tpu.memory_space<vmem>>, %arg3: memref<16x128xf32, #tpu.memory_space<vmem>>, %arg4: memref<8x8xf32, #tpu.memory_space<vmem>>) attributes {dimension_semantics = [#tpu.dimension_semantics<parallel>], iteration_bounds = array<i64: 1>, scalar_prefetch = 0 : i64, scratch_operands = 0 : i64, tpu.core_type = #tpu.core_type<tc>, window_params = [{transform_indices = @transform_0, window_bounds = array<i64: 8, 33>}, {pipeline_mode = #tpu.pipeline_mode<synchronous>, transform_indices = @transform_1, window_bounds = array<i64: 256, 128>}, {pipeline_mode = #tpu.pipeline_mode<synchronous>, transform_indices = @transform_2, window_bounds = array<i64: 16, 128>}, {transform_indices = @transform_3, window_bounds = array<i64: 8, 8>}]} {
    %c0 = arith.constant 0 : index
    %c0_0 = arith.constant 0 : index
    %0 = vector.load %arg1[%c0, %c0_0] : memref<8x33xf32, #tpu.memory_space<vmem>>, vector<8x33xf32>
    %c0_1 = arith.constant 0 : index
    %c0_2 = arith.constant 0 : index
    %1 = vector.load %arg2[%c0_1, %c0_2] : memref<256x128xf32, #tpu.memory_space<vmem>>, vector<33x128xf32>
    %c128 = arith.constant 128 : index
    %c0_3 = arith.constant 0 : index
    %2 = vector.load %arg2[%c128, %c0_3] : memref<256x128xf32, #tpu.memory_space<vmem>>, vector<128x128xf32>
    %c0_4 = arith.constant 0 : index
    %c0_5 = arith.constant 0 : index
    %3 = vector.load %arg3[%c0_4, %c0_5] : memref<16x128xf32, #tpu.memory_space<vmem>>, vector<8x128xf32>
    %c8 = arith.constant 8 : index
    %c0_6 = arith.constant 0 : index
    %4 = vector.load %arg3[%c8, %c0_6] : memref<16x128xf32, #tpu.memory_space<vmem>>, vector<1x128xf32>
    %c9 = arith.constant 9 : index
    %c0_7 = arith.constant 0 : index
    %5 = vector.load %arg3[%c9, %c0_7] : memref<16x128xf32, #tpu.memory_space<vmem>>, vector<1x128xf32>
    %cst = arith.constant dense<0.000000e+00> : vector<8x128xf32>
    %6 = tpu.matmul %0, %1, %cst {dimension_numbers = #tpu.dot_dimension_numbers<[1], [0], [0], [1], [0, 0, 1, 1], [], []>} : vector<8x33xf32>, vector<33x128xf32>, vector<8x128xf32> -> vector<8x128xf32>
    %7 = vector.broadcast %4 : vector<1x128xf32> to vector<8x128xf32>
    %8 = arith.addf %6, %7 : vector<8x128xf32>
    %cst_8 = arith.constant 0.000000e+00 : f32
    %9 = vector.broadcast %cst_8 : f32 to vector<8x128xf32>
    %10 = arith.maximumf %8, %9 : vector<8x128xf32>
    %cst_9 = arith.constant dense<0.000000e+00> : vector<8x128xf32>
    %11 = tpu.matmul %10, %2, %cst_9 {dimension_numbers = #tpu.dot_dimension_numbers<[1], [0], [0], [1], [0, 0, 1, 1], [], []>} : vector<8x128xf32>, vector<128x128xf32>, vector<8x128xf32> -> vector<8x128xf32>
    %12 = vector.broadcast %5 : vector<1x128xf32> to vector<8x128xf32>
    %13 = arith.addf %11, %12 : vector<8x128xf32>
    %cst_10 = arith.constant 0.000000e+00 : f32
    %14 = vector.broadcast %cst_10 : f32 to vector<8x128xf32>
    %15 = arith.maximumf %13, %14 : vector<8x128xf32>
    %16 = tpu.transpose %15, [1, 0] : vector<8x128xf32> -> vector<128x8xf32>
    %cst_11 = arith.constant dense<0.000000e+00> : vector<8x8xf32>
    %17 = tpu.matmul %3, %16, %cst_11 {dimension_numbers = #tpu.dot_dimension_numbers<[1], [0], [0], [1], [0, 0, 1, 1], [], []>} : vector<8x128xf32>, vector<128x8xf32>, vector<8x8xf32> -> vector<8x8xf32>
    %18 = arith.negf %17 : vector<8x8xf32>
    %19 = math.exp %18 : vector<8x8xf32>
    %cst_12 = arith.constant 1.000000e+00 : f32
    %20 = vector.broadcast %cst_12 : f32 to vector<8x8xf32>
    %21 = arith.addf %20, %19 : vector<8x8xf32>
    %22 = arith.divf %20, %21 : vector<8x8xf32>
    %c0_13 = arith.constant 0 : index
    %c0_14 = arith.constant 0 : index
    %23 = vector.load %arg4[%c0_13, %c0_14] : memref<8x8xf32, #tpu.memory_space<vmem>>, vector<8x8xf32>
    tpu.vector_store %arg4[%c0_13, %c0_14], %22 {strides = array<i32>} : memref<8x8xf32, #tpu.memory_space<vmem>>, vector<8x8xf32>,
    return
  }
  func.func @transform_0(%arg0: i32) -> (i32, i32) {
    %c0_i32 = arith.constant 0 : i32
    %c0_i32_0 = arith.constant 0 : i32
    return %arg0, %c0_i32 : i32, i32
  }
  func.func @transform_1(%arg0: i32) -> (i32, i32) {
    %c0_i32 = arith.constant 0 : i32
    %c0_i32_0 = arith.constant 0 : i32
    %c0_i32_1 = arith.constant 0 : i32
    return %c0_i32, %c0_i32_0 : i32, i32
  }
  func.func @transform_2(%arg0: i32) -> (i32, i32) {
    %c0_i32 = arith.constant 0 : i32
    %c0_i32_0 = arith.constant 0 : i32
    %c0_i32_1 = arith.constant 0 : i32
    return %c0_i32, %c0_i32_0 : i32, i32
  }
  func.func @transform_3(%arg0: i32) -> (i32, i32) {
    %c0_i32 = arith.constant 0 : i32
    %c0_i32_0 = arith.constant 0 : i32
    return %c0_i32, %arg0 : i32, i32
  }
}

</mosaic_0001>

<llo_original>
// kernel: tpu_custom_call.1
$region0: #{tpu_custom_call.1}
  #allocation0 [shape = 'u32[]', space=smem, size = 0x4, offset = 0x4, fixed_abs, tag = 'smem constant byte address 0x4 - core index']
  #allocation1 [shape = 'u32[144,128]{1,0:T(1,128)}', space=vmem, size = 0x12000, scoped, tag = 'internal scratch']
  %s0 = inlined_call_operand.hbm [shape: f32[8,33], index: 0, kind: input, shape index: {}]
  %s1 = inlined_call_operand.hbm [shape: f32[256,128], index: 1, kind: input, shape index: {}]
  %s2 = inlined_call_operand.hbm [shape: f32[16,128], index: 2, kind: input, shape index: {}]
  %s3 = inlined_call_operand.hbm [shape: f32[8,8], index: 3, kind: output, shape index: {}]
  %s4 = sld [smem:[#allocation0]]
  $region34: #{tpu_custom_call.1} parent=0
    _
  %s6 = ssub.s32 1, %s4
  %s7 = scalar_select 0, %s6, %s4
  $region1: #{tpu_custom_call.1} parent=0
    #allocation2 [shape = 'u8[4096]{0}', space=vmem, size = 0x1000, scoped, tag = 'input window, operand 0, single buffered']
    #allocation3 [shape = 's32[1]{0}', space=sflag, size = 0x4, scoped, tag = 'scoped memory for tpu_custom_call.1']
    #allocation4 [shape = 's32[1]{0}', space=sflag, size = 0x4, scoped, tag = 'scoped memory for tpu_custom_call.1']
    #allocation5 [shape = 'u8[131072]{0}', space=vmem, size = 0x20000, scoped, tag = 'input window, operand 1, single buffered']
    #allocation6 [shape = 's32[1]{0}', space=sflag, size = 0x4, scoped, tag = 'scoped memory for tpu_custom_call.1']
    #allocation7 [shape = 'u8[8192]{0}', space=vmem, size = 0x2000, scoped, tag = 'input window, operand 2, single buffered']
    #allocation8 [shape = 'u8[4096]{0}', space=vmem, size = 0x1000, scoped, tag = 'output window, operand 0, single buffered']
    %8 = vsyncpa [#allocation3], 0
    %9 = vsyncpa [#allocation6], 0
    %10 = vsyncpa [#allocation4], 0
    // Predicated region
    $region2: #{tpu_custom_call.1} parent=1 // pred_check
      _
    $region3: #{tpu_custom_call.1} parent=1 // pred_check_branch
      %12 = sbr.rel (0) target = $region5
    $region4: #{tpu_custom_call.1} parent=1 // pred_region
      %s14 = ssub.s32 128, 128
      %15 = vsyncadd [#allocation3], %s14
      %s17 = sshll.u32 [#allocation2], 4
      %s18 = int_to_ptr.vmem [resolvable:$true] %s17
      %20 = dma.hbm_to_vmem [thread:$0]  %s0, 128, %s18, [#allocation3]
    $region5: #{tpu_custom_call.1} parent=1 // pred_fallthru
      _
    // Predicated region
    $region6: #{tpu_custom_call.1} parent=1 // pred_check
      _
    $region7: #{tpu_custom_call.1} parent=1 // pred_check_branch
      %22 = sbr.rel (0) target = $region9
    $region8: #{tpu_custom_call.1} parent=1 // pred_region
      %s24 = ssub.s32 4096, 4096
      %25 = vsyncadd [#allocation6], %s24
      %s26 = sshll.u32 [#allocation5], 4
      %s27 = int_to_ptr.vmem [resolvable:$true] %s26
      %32 = dma.hbm_to_vmem [thread:$0]  %s1, 4096, %s27, [#allocation6], 128, 128, 8
    $region9: #{tpu_custom_call.1} parent=1 // pred_fallthru
      _
    // Predicated region
    $region10: #{tpu_custom_call.1} parent=1 // pred_check
      _
    $region11: #{tpu_custom_call.1} parent=1 // pred_check_branch
      %34 = sbr.rel (0) target = $region13
    $region12: #{tpu_custom_call.1} parent=1 // pred_region
      %s36 = ssub.s32 256, 256
      %37 = vsyncadd [#allocation6], %s36
      %s38 = sshll.u32 [#allocation7], 4
      %s39 = int_to_ptr.vmem [resolvable:$true] %s38
      %44 = dma.hbm_to_vmem [thread:$0]  %s2, 256, %s39, [#allocation6], 128, 128, 8
    $region13: #{tpu_custom_call.1} parent=1 // pred_fallthru
      _
    // Predicated region
    $region14: #{tpu_custom_call.1} parent=1 // pred_check
      _
    $region15: #{tpu_custom_call.1} parent=1 // pred_check_branch
      %46 = sbr.rel (0) target = $region17
    $region16: #{tpu_custom_call.1} parent=1 // pred_region
      %47 = dma.done [#allocation3], 128
    $region17: #{tpu_custom_call.1} parent=1 // pred_fallthru
      _
    // Predicated region
    $region18: #{tpu_custom_call.1} parent=1 // pred_check
      _
    $region19: #{tpu_custom_call.1} parent=1 // pred_check_branch
      %49 = sbr.rel (0) target = $region21
    $region20: #{tpu_custom_call.1} parent=1 // pred_region
      %50 = dma.done [#allocation6], 4096
    $region21: #{tpu_custom_call.1} parent=1 // pred_fallthru
      _
    // Predicated region
    $region22: #{tpu_custom_call.1} parent=1 // pred_check
      _
    $region23: #{tpu_custom_call.1} parent=1 // pred_check_branch
      %52 = sbr.rel (0) target = $region25
    $region24: #{tpu_custom_call.1} parent=1 // pred_region
      %53 = dma.done [#allocation6], 256
    $region25: #{tpu_custom_call.1} parent=1 // pred_fallthru
      _
    %v54 = vld [vmem:[#allocation2] sm:$0xff]
    %v55 = vld [vmem:[#allocation5] sm:$0xff]
    %v56 = vld [vmem:[#allocation5 + $0x8] sm:$0xff]
    %v57 = vld [vmem:[#allocation5 + $0x10] sm:$0xff]
    %v58 = vld [vmem:[#allocation5 + $0x18] sm:$0xff]
    %v59 = vld [vmem:[#allocation5 + $0x20] sm:$0x1]
    %v60 = vld [vmem:[#allocation5 + $0x80] sm:$0xff]
    %v61 = vld [vmem:[#allocation5 + $0x88] sm:$0xff]
    %v62 = vld [vmem:[#allocation5 + $0x90] sm:$0xff]
    %v63 = vld [vmem:[#allocation5 + $0x98] sm:$0xff]
    %v64 = vld [vmem:[#allocation5 + $0xa0] sm:$0xff]
    %v65 = vld [vmem:[#allocation5 + $0xa8] sm:$0xff]
    %v66 = vld [vmem:[#allocation5 + $0xb0] sm:$0xff]
    %v67 = vld [vmem:[#allocation5 + $0xb8] sm:$0xff]
    %v68 = vld [vmem:[#allocation5 + $0xc0] sm:$0xff]
    %v69 = vld [vmem:[#allocation5 + $0xc8] sm:$0xff]
    %v70 = vld [vmem:[#allocation5 + $0xd0] sm:$0xff]
    %v71 = vld [vmem:[#allocation5 + $0xd8] sm:$0xff]
    %v72 = vld [vmem:[#allocation5 + $0xe0] sm:$0xff]
    %v73 = vld [vmem:[#allocation5 + $0xe8] sm:$0xff]
    %v74 = vld [vmem:[#allocation5 + $0xf0] sm:$0xff]
    %v75 = vld [vmem:[#allocation5 + $0xf8] sm:$0xff]
    %v76 = vld [vmem:[#allocation7] sm:$0xff]
    %v77 = vld [vmem:[#allocation7 + $0x8] sm:$0x1]
    %v78 = vld [vmem:[#allocation7 + $0x9] sm:$0x1]
    %v79 = vlaneseq
    %v80 = vshrl.u32 %v79, 7
    %v81 = vsub.s32 0, %v80
    %v82 = vrot.slane %v77, %v81
    %vm83 = vcmask 269312
    %v85 = vsel %vm83, %v54, 0
    %vm87 = vcmask 1040384
    %v89 = vsel %vm87, %v59, 0
    %91 = vmatprep.subr.mxu0 0.0
    %92 = vmatpush1.msra.mxu0 0.0
    %93 = vmatprep.subr.mxu0 0.0
    %94 = vmatpush1.msra.mxu0 0.0
    %95 = vmatprep.subr.mxu0 0.0
    %96 = vmatpush1.msra.mxu0 0.0
    %97 = vmatprep.subr.mxu0 0.0
    %98 = vmatpush1.msra.mxu0 0.0
    %99 = vmatprep.subr.mxu0 0.0
    %100 = vmatpush1.msra.mxu0 0.0
    %101 = vmatprep.subr.mxu0 0.0
    %102 = vmatpush1.msra.mxu0 0.0
    %103 = vmatprep.subr.mxu0 0.0
    %104 = vmatpush1.msra.mxu0 0.0
    %105 = vmatprep.subr.mxu0 0.0
    %106 = vmatpush1.msra.mxu0 0.0
    %107 = vmatprep.subr.mxu0 0.0
    %108 = vmatpush1.msra.mxu0 0.0
    %109 = vmatprep.subr.mxu0 0.0
    %110 = vmatpush1.msra.mxu0 0.0
    %111 = vmatprep.subr.mxu0 0.0
    %112 = vmatpush1.msra.mxu0 0.0
    %113 = vmatprep.subr.mxu0 0.0
    %114 = vmatpush1.msra.mxu0 %v89
    %115 = vmatprep.subr.mxu0 0.0
    %116 = vmatpush1.msra.mxu0 %v58
    %117 = vmatprep.subr.mxu0 0.0
    %118 = vmatpush1.msra.mxu0 %v57
    %119 = vmatprep.subr.mxu0 0.0
    %120 = vmatpush1.msra.mxu0 %v56
    %121 = vmatprep.subr.mxu0 0.0
    %122 = vmatpush1.msra.mxu0 %v55
    %123 = vmatprep.subr.mxu0 0.0
    %124 = vmatpush2.msra.mxu0 0.0
    %125 = vmatprep.subr.mxu0 0.0
    %126 = vmatpush2.msra.mxu0 0.0
    %127 = vmatprep.subr.mxu0 0.0
    %128 = vmatpush2.msra.mxu0 0.0
    %129 = vmatprep.subr.mxu0 0.0
    %130 = vmatpush2.msra.mxu0 0.0
    %131 = vmatprep.subr.mxu0 0.0
    %132 = vmatpush2.msra.mxu0 0.0
    %133 = vmatprep.subr.mxu0 0.0
    %134 = vmatpush2.msra.mxu0 0.0
    %135 = vmatprep.subr.mxu0 0.0
    %136 = vmatpush2.msra.mxu0 0.0
    %137 = vmatprep.subr.mxu0 0.0
    %138 = vmatpush2.msra.mxu0 0.0
    %139 = vmatprep.subr.mxu0 0.0
    %140 = vmatpush2.msra.mxu0 0.0
    %141 = vmatprep.subr.mxu0 0.0
    %142 = vmatpush2.msra.mxu0 0.0
    %143 = vmatprep.subr.mxu0 0.0
    %144 = vmatpush2.msra.mxu0 0.0
    %145 = vmatprep.subr.mxu0 0.0
    %146 = vmatpush2.msra.mxu0 0.0
    %147 = vmatprep.subr.mxu0 0.0
    %148 = vmatpush2.msra.mxu0 0.0
    %149 = vmatprep.subr.mxu0 0.0
    %150 = vmatpush2.msra.mxu0 0.0
    %151 = vmatprep.subr.mxu0 0.0
    %152 = vmatpush2.msra.mxu0 0.0
    %153 = vmatprep.subr.mxu0 0.0
    %154 = vmatpush2.msra.mxu0 0.0
    %155 = vmatprep.mubr.f32.mxu0 0.0
    %156 = vmatmul.mubr.f32.gmra.mxu0 %v85
    %v157 = vpop.f32.mrf.mxu0
    %v158 = vadd.f32 %v82, %v157
    %v159 = vpop.f32.mrf.mxu0
    %160 = vdwg.mxu0
    %v161 = vmax.f32 %v158, 0.0
    %v162 = vlaneseq
    %v163 = vshrl.u32 %v162, 7
    %v164 = vsub.s32 0, %v163
    %v165 = vrot.slane %v78, %v164
    %166 = vmatprep.subr.mxu0 0.0
    %167 = vmatpush1.msra.mxu0 %v75
    %168 = vmatprep.subr.mxu0 0.0
    %169 = vmatpush1.msra.mxu0 %v74
    %170 = vmatprep.subr.mxu0 0.0
    %171 = vmatpush1.msra.mxu0 %v73
    %172 = vmatprep.subr.mxu0 0.0
    %173 = vmatpush1.msra.mxu0 %v72
    %174 = vmatprep.subr.mxu0 0.0
    %175 = vmatpush1.msra.mxu0 %v71
    %176 = vmatprep.subr.mxu0 0.0
    %177 = vmatpush1.msra.mxu0 %v70
    %178 = vmatprep.subr.mxu0 0.0
    %179 = vmatpush1.msra.mxu0 %v69
    %180 = vmatprep.subr.mxu0 0.0
    %181 = vmatpush1.msra.mxu0 %v68
    %182 = vmatprep.subr.mxu0 0.0
    %183 = vmatpush1.msra.mxu0 %v67
    %184 = vmatprep.subr.mxu0 0.0
    %185 = vmatpush1.msra.mxu0 %v66
    %186 = vmatprep.subr.mxu0 0.0
    %187 = vmatpush1.msra.mxu0 %v65
    %188 = vmatprep.subr.mxu0 0.0
    %189 = vmatpush1.msra.mxu0 %v64
    %190 = vmatprep.subr.mxu0 0.0
    %191 = vmatpush1.msra.mxu0 %v63
    %192 = vmatprep.subr.mxu0 0.0
    %193 = vmatpush1.msra.mxu0 %v62
    %194 = vmatprep.subr.mxu0 0.0
    %195 = vmatpush1.msra.mxu0 %v61
    %196 = vmatprep.subr.mxu0 0.0
    %197 = vmatpush1.msra.mxu0 %v60
    %198 = vmatprep.subr.mxu0 0.0
    %199 = vmatpush2.msra.mxu0 0.0
    %200 = vmatprep.subr.mxu0 0.0
    %201 = vmatpush2.msra.mxu0 0.0
    %202 = vmatprep.subr.mxu0 0.0
    %203 = vmatpush2.msra.mxu0 0.0
    %204 = vmatprep.subr.mxu0 0.0
    %205 = vmatpush2.msra.mxu0 0.0
    %206 = vmatprep.subr.mxu0 0.0
    %207 = vmatpush2.msra.mxu0 0.0
    %208 = vmatprep.subr.mxu0 0.0
    %209 = vmatpush2.msra.mxu0 0.0
    %210 = vmatprep.subr.mxu0 0.0
    %211 = vmatpush2.msra.mxu0 0.0
    %212 = vmatprep.subr.mxu0 0.0
    %213 = vmatpush2.msra.mxu0 0.0
    %214 = vmatprep.subr.mxu0 0.0
    %215 = vmatpush2.msra.mxu0 0.0
    %216 = vmatprep.subr.mxu0 0.0
    %217 = vmatpush2.msra.mxu0 0.0
    %218 = vmatprep.subr.mxu0 0.0
    %219 = vmatpush2.msra.mxu0 0.0
    %220 = vmatprep.subr.mxu0 0.0
    %221 = vmatpush2.msra.mxu0 0.0
    %222 = vmatprep.subr.mxu0 0.0
    %223 = vmatpush2.msra.mxu0 0.0
    %224 = vmatprep.subr.mxu0 0.0
    %225 = vmatpush2.msra.mxu0 0.0
    %226 = vmatprep.subr.mxu0 0.0
    %227 = vmatpush2.msra.mxu0 0.0
    %228 = vmatprep.subr.mxu0 0.0
    %229 = vmatpush2.msra.mxu0 0.0
    %230 = vmatprep.mubr.f32.mxu0 0.0
    %231 = vmatmul.mubr.f32.gmra.mxu0 %v161
    %v232 = vpop.f32.mrf.mxu0
    %v233 = vadd.f32 %v165, %v232
    %v234 = vpop.f32.mrf.mxu0
    %235 = vdwg.mxu0
    %v236 = vmax.f32 %v233, 0.0
    %237 = vmatprep.subr.mxu0 0.0
    %238 = vmatpush1.xpose.msra.mxu0 0.0
    %239 = vmatprep.subr.mxu0 0.0
    %240 = vmatpush1.xpose.msra.mxu0 0.0
    %241 = vmatprep.subr.mxu0 0.0
    %242 = vmatpush1.xpose.msra.mxu0 0.0
    %243 = vmatprep.subr.mxu0 0.0
    %244 = vmatpush1.xpose.msra.mxu0 0.0
    %245 = vmatprep.subr.mxu0 0.0
    %246 = vmatpush1.xpose.msra.mxu0 0.0
    %247 = vmatprep.subr.mxu0 0.0
    %248 = vmatpush1.xpose.msra.mxu0 0.0
    %249 = vmatprep.subr.mxu0 0.0
    %250 = vmatpush1.xpose.msra.mxu0 0.0
    %251 = vmatprep.subr.mxu0 0.0
    %252 = vmatpush1.xpose.msra.mxu0 0.0
    %253 = vmatprep.subr.mxu0 0.0
    %254 = vmatpush1.xpose.msra.mxu0 0.0
    %255 = vmatprep.subr.mxu0 0.0
    %256 = vmatpush1.xpose.msra.mxu0 0.0
    %257 = vmatprep.subr.mxu0 0.0
    %258 = vmatpush1.xpose.msra.mxu0 0.0
    %259 = vmatprep.subr.mxu0 0.0
    %260 = vmatpush1.xpose.msra.mxu0 0.0
    %261 = vmatprep.subr.mxu0 0.0
    %262 = vmatpush1.xpose.msra.mxu0 0.0
    %263 = vmatprep.subr.mxu0 0.0
    %264 = vmatpush1.xpose.msra.mxu0 0.0
    %265 = vmatprep.subr.mxu0 0.0
    %266 = vmatpush1.xpose.msra.mxu0 0.0
    %267 = vmatprep.subr.mxu0 0.0
    %268 = vmatpush1.xpose.msra.mxu0 %v236
    %269 = vmatprep.subr.mxu0 0.0
    %270 = vmatpush2.xpose.msra.mxu0 0.0
    %271 = vmatprep.subr.mxu0 0.0
    %272 = vmatpush2.xpose.msra.mxu0 0.0
    %273 = vmatprep.subr.mxu0 0.0
    %274 = vmatpush2.xpose.msra.mxu0 0.0
    %275 = vmatprep.subr.mxu0 0.0
    %276 = vmatpush2.xpose.msra.mxu0 0.0
    %277 = vmatprep.subr.mxu0 0.0
    %278 = vmatpush2.xpose.msra.mxu0 0.0
    %279 = vmatprep.subr.mxu0 0.0
    %280 = vmatpush2.xpose.msra.mxu0 0.0
    %281 = vmatprep.subr.mxu0 0.0
    %282 = vmatpush2.xpose.msra.mxu0 0.0
    %283 = vmatprep.subr.mxu0 0.0
    %284 = vmatpush2.xpose.msra.mxu0 0.0
    %285 = vmatprep.subr.mxu0 0.0
    %286 = vmatpush2.xpose.msra.mxu0 0.0
    %287 = vmatprep.subr.mxu0 0.0
    %288 = vmatpush2.xpose.msra.mxu0 0.0
    %289 = vmatprep.subr.mxu0 0.0
    %290 = vmatpush2.xpose.msra.mxu0 0.0
    %291 = vmatprep.subr.mxu0 0.0
    %292 = vmatpush2.xpose.msra.mxu0 0.0
    %293 = vmatprep.subr.mxu0 0.0
    %294 = vmatpush2.xpose.msra.mxu0 0.0
    %295 = vmatprep.subr.mxu0 0.0
    %296 = vmatpush2.xpose.msra.mxu0 0.0
    %297 = vmatprep.subr.mxu0 0.0
    %298 = vmatpush2.xpose.msra.mxu0 0.0
    %299 = vmatprep.subr.mxu0 0.0
    %300 = vmatpush2.xpose.msra.mxu0 0.0
    %301 = vmatprep.mubr.f32.mxu0 0.0
    %302 = vmatmul.mubr.f32.gmra.mxu0 %v76
    %v303 = vpop.f32.mrf.mxu0
    %v304 = vadd.f32 0.0, %v303
    %v305 = vpop.f32.mrf.mxu0
    %306 = vdwg.mxu0
    %v307 = vxor.u32 %v304, 2147483648
    %v308 = vmul.f32 %v307, 1.442695
    %v309 = vpow.pop %v308
    %v310 = vadd.f32 %v309, 1.0
    %v311 = vrcp.pop %v310
    %v312 = vmul.f32 1.0, %v311
    %vm313 = vcmask 64512
    %314 = vst.msk [vmem:[#allocation8] sm:$0xff] %vm313, %v312
    // Predicated region
    $region26: #{tpu_custom_call.1} parent=1 // pred_check
      _
    $region27: #{tpu_custom_call.1} parent=1 // pred_check_branch
      %316 = sbr.rel (0) target = $region29
    $region28: #{tpu_custom_call.1} parent=1 // pred_region
      %s318 = ssub.s32 128, 128
      %319 = vsyncadd [#allocation4], %s318
      %s321 = sshll.u32 [#allocation8], 4
      %s322 = int_to_ptr.vmem [resolvable:$true] %s321
      %324 = dma.vmem_to_hbm [thread:$0]  %s322, 128, %s3, [#allocation4]
    $region29: #{tpu_custom_call.1} parent=1 // pred_fallthru
      _
    // Predicated region
    $region30: #{tpu_custom_call.1} parent=1 // pred_check
      _
    $region31: #{tpu_custom_call.1} parent=1 // pred_check_branch
      %326 = sbr.rel (0) target = $region33
    $region32: #{tpu_custom_call.1} parent=1 // pred_region
      %327 = dma.done [#allocation4], 128
    $region33: #{tpu_custom_call.1} parent=1 // pred_fallthru
      _
    %328 = vsyncpa [#allocation3], 1
    %329 = vsyncpa [#allocation6], 1
    %330 = vsyncpa [#allocation4], 1

</llo_original>
